<compile_context>
chip_gen: v7x
topology: tpu7x:2x2x1
jax: 0.10.0
libtpu: 0.0.40
codegen_flags: <defaults>
</compile_context>

<pallas_src>
import functools

import jax
import jax.numpy as jnp
from jax import lax
from jax.experimental import pallas as pl
from jax.experimental.pallas import tpu as pltpu


# --------------------------------- kernels ------------------------------------
def _sdconv_stats_kernel(u_t_ref, u_m_ref, u_b_ref,
                         v_t_ref, v_m_ref, v_b_ref,
                         w_ref, acc_ref, stats_ref, su_ref, *,
                         lam2, C, W):
    """Pass 1 (one image row per grid step): in-kernel 3x3 unfold, S_U
    construction, fused K=9C SDConv matmul, BatchNorm partial statistics.

    u_*_ref / v_*_ref : (W+2, C)  padded image rows h-1 / h / h+1 (channels last)
    w_ref             : (9C, OC)  SDConv weight (bf16), row index = tap*C + c
    acc_ref           : (W, OC)   SDConv output row (bf16)
    stats_ref         : (2, OC)   per-row [sum ; sum of squares] (f32)
    su_ref            : (W, 9C)   f32 VMEM scratch holding S_U for this row
    """
    inv_lam2 = 1.0 / lam2
    u_rows = (u_t_ref[...], u_m_ref[...], u_b_ref[...])
    v_rows = (v_t_ref[...], v_m_ref[...], v_b_ref[...])
    u_cen = u_rows[1][1:1 + W, :]             # centre tap (kh=1, kw=1)
    v_cen = v_rows[1][1:1 + W, :]

    for kh in range(3):                        # unrolled at trace time
        u_row = u_rows[kh]
        v_row = v_rows[kh]
        for kw in range(3):
            k = kh * 3 + kw
            du = u_row[kw:kw + W, :] - u_cen
            dv = v_row[kw:kw + W, :] - v_cen
            s_v = lax.rsqrt(1.0 + dv * dv * inv_lam2)   # EUP rsqrt
            su_ref[:, k * C:(k + 1) * C] = du * s_v

    # single fused K = 9C MXU contraction: bf16 operands, f32 accumulation
    acc = jnp.dot(su_ref[...].astype(jnp.bfloat16), w_ref[...],
                  preferred_element_type=jnp.float32)
    acc_ref[...] = acc.astype(acc_ref.dtype)

    # BatchNorm partial stats from the f32 accumulator (two direct stores)
    stats_ref[0:1, :] = jnp.sum(acc, axis=0, keepdims=True)
    stats_ref[1:2, :] = jnp.sum(acc * acc, axis=0, keepdims=True)


def _bn_relu_out_kernel(acc_ref, u_row_ref, scale_ref, shift_ref,
                        wu_ref, wx_ref, ob_ref, out_ref, *, W):
    """Pass 2 (one image row per grid step): folded BatchNorm affine + ReLU +
    split 1x1 output conv:  out = U @ W_u + relu(bn(acc)) @ W_x + b.

    acc_ref    : (W, OC)   SDConv output row (bf16)
    u_row_ref  : (W+2, C)  padded image row h (centre pixels in cols 1..W)
    scale/shift: (1, OC)   folded BN gamma/beta with global batch statistics
    wu_ref     : (C, C)    1x1 weight slice acting on U  (f32, not renormalised)
    wx_ref     : (OC, C)   1x1 weight slice acting on BN(ReLU(SDConv))
    ob_ref     : (1, C)    1x1 bias
    out_ref    : (W, C)
    """
    x = acc_ref[...].astype(jnp.float32) * scale_ref[...] + shift_ref[...]
    x = jnp.maximum(x, 0.0)
    u_cen = u_row_ref[1:1 + W, :]
    out = jnp.dot(u_cen, wu_ref[...], preferred_element_type=jnp.float32)
    out = out + jnp.dot(x, wx_ref[...], preferred_element_type=jnp.float32)
    out_ref[...] = out + ob_ref[...]


# --------------------------------- wrapper ------------------------------------
def sdnet_forward(U, V, params, lambda_: float, *, bn_eps: float = 1e-5):
    """U, V: (B, C, H, W) float32 (PyTorch NCHW). Returns (B, C, H, W) float32."""
    B, C, H, W = U.shape
    OC = params["sdc_w"].shape[0]
    M = B * H * W
    K = 9 * C
    assert W % 8 == 0, "image width must be a multiple of 8 (sublane tiling)"

    # ---- layout plumbing in XLA: NCHW -> NHWC + one-pixel zero halo -----------
    u_pad = jnp.pad(jnp.transpose(U, (0, 2, 3, 1)).astype(jnp.float32),
                    ((0, 0), (1, 1), (1, 1), (0, 0)))
    v_pad = jnp.pad(jnp.transpose(V, (0, 2, 3, 1)).astype(jnp.float32),
                    ((0, 0), (1, 1), (1, 1), (0, 0)))

    # ---- parameter repacking ----------------------------------------------------
    # (OC, C, 3, 3) -> (9C, OC), row index = tap*C + c (matches scratch columns)
    w_sd = jnp.transpose(params["sdc_w"].reshape(OC, C, 9),
                         (2, 1, 0)).reshape(K, OC).astype(jnp.bfloat16)
    ow = jnp.transpose(params["out_w"].reshape(C, C + OC), (1, 0))    # (C+OC, C)
    w_u = ow[:C].astype(jnp.float32)                                  # acts on U
    w_x = ow[C:].astype(jnp.float32)                                  # acts on x
    ob = params["out_b"].reshape(1, C).astype(jnp.float32)

    grid = (B, H)
    row_block = (None, None, W + 2, C)        # one padded image row, channels last

    def shifted_row_spec(off):
        # `off` padded rows below the output row: 0 -> h-1, 1 -> h, 2 -> h+1.
        return pl.BlockSpec(row_block, lambda b, h: (b, h + off, 0, 0))

    # ---- Pass 1: in-kernel unfold + SDConv + BN partial stats ------------------
    pass1 = pl.pallas_call(
        functools.partial(_sdconv_stats_kernel,
                          lam2=float(lambda_) ** 2, C=C, W=W),
        grid=grid,
        in_specs=[
            shifted_row_spec(0), shifted_row_spec(1), shifted_row_spec(2),   # U
            shifted_row_spec(0), shifted_row_spec(1), shifted_row_spec(2),   # V
            pl.BlockSpec((K, OC), lambda b, h: (0, 0)),                      # weight
        ],
        out_specs=[
            pl.BlockSpec((W, OC), lambda b, h: (b * H + h, 0)),
            pl.BlockSpec((None, 2, OC), lambda b, h: (b * H + h, 0, 0)),
        ],
        out_shape=[
            jax.ShapeDtypeStruct((M, OC), jnp.bfloat16),
            jax.ShapeDtypeStruct((B * H, 2, OC), jnp.float32),
        ],
        scratch_shapes=[pltpu.VMEM((W, K), jnp.float32)],
        compiler_params=pltpu.CompilerParams(
            dimension_semantics=("parallel", "parallel")),
        cost_estimate=pl.CostEstimate(
            flops=2 * M * K * OC + 7 * M * K,
            transcendentals=M * K,
            bytes_accessed=4 * 6 * B * (H + 2) * (W + 2) * C
                           + 2 * M * OC + 2 * K * OC + 8 * B * H * OC),
    )
    acc, stats = pass1(u_pad, u_pad, u_pad, v_pad, v_pad, v_pad, w_sd)

    # ---- global BatchNorm statistics (tiny reduction; no padded rows exist) ----
    total = jnp.sum(stats, axis=0)                  # (2, OC)
    mean = total[0] / M
    # TODO(synk): one-pass E[x^2]-mean^2 can cancel badly if trained weights give
    # a large mean/std ratio; switch to per-tile (count, mean, M2) if that bites.
    var = jnp.maximum(total[1] / M - mean * mean, 0.0)
    inv_std = lax.rsqrt(var + bn_eps)
    gamma = params["bn_gamma"].astype(jnp.float32)
    beta = params["bn_beta"].astype(jnp.float32)
    scale = (gamma * inv_std).reshape(1, OC)
    shift = (beta - mean * gamma * inv_std).reshape(1, OC)

    # ---- Pass 2: BN affine + ReLU + split 1x1 conv ------------------------------
    pass2 = pl.pallas_call(
        functools.partial(_bn_relu_out_kernel, W=W),
        grid=grid,
        in_specs=[
            pl.BlockSpec((W, OC), lambda b, h: (b * H + h, 0)),       # acc
            shifted_row_spec(1),                                      # centre U row
            pl.BlockSpec((1, OC), lambda b, h: (0, 0)),               # scale
            pl.BlockSpec((1, OC), lambda b, h: (0, 0)),               # shift
            pl.BlockSpec((C, C), lambda b, h: (0, 0)),                # w_u
            pl.BlockSpec((OC, C), lambda b, h: (0, 0)),               # w_x
            pl.BlockSpec((1, C), lambda b, h: (0, 0)),                # bias
        ],
        out_specs=pl.BlockSpec((W, C), lambda b, h: (b * H + h, 0)),
        out_shape=jax.ShapeDtypeStruct((M, C), jnp.float32),
        compiler_params=pltpu.CompilerParams(
            dimension_semantics=("parallel", "parallel")),
        cost_estimate=pl.CostEstimate(
            flops=2 * M * (C + OC) * C + 4 * M * OC,
            transcendentals=0,
            bytes_accessed=2 * M * OC + 4 * B * H * (W + 2) * C + 4 * M * C
                           + 4 * (C + OC) * C),
    )
    out_flat = pass2(acc, u_pad, scale, shift, w_u, w_x, ob)

    return jnp.transpose(out_flat.reshape(B, H, W, C), (0, 3, 1, 2))


# ----------------------------- pure-JAX reference ------------------------------
def sdnet_ref(U, V, params, lambda_: float, bn_eps: float = 1e-5):
    B, C, H, W = U.shape
    OC = params["sdc_w"].shape[0]
    Upad = jnp.pad(U, ((0, 0), (0, 0), (1, 1), (1, 1)))
    Vpad = jnp.pad(V, ((0, 0), (0, 0), (1, 1), (1, 1)))
    u_unf = jnp.stack([Upad[:, :, kh:kh + H, kw:kw + W]
                       for kh in range(3) for kw in range(3)], axis=2)
    v_unf = jnp.stack([Vpad[:, :, kh:kh + H, kw:kw + W]
                       for kh in range(3) for kw in range(3)], axis=2)
    du = u_unf - u_unf[:, :, 4:5]
    dv = v_unf - v_unf[:, :, 4:5]
    sv = 1.0 / jnp.sqrt(1.0 + dv * dv / (lambda_ ** 2))
    su = du * sv
    x = jnp.einsum("ijklm,njk->inlm", su, params["sdc_w"].reshape(OC, C, 9))
    mean = x.mean(axis=(0, 2, 3), keepdims=True)
    var = ((x - mean) ** 2).mean(axis=(0, 2, 3), keepdims=True)
    x = (x - mean) / jnp.sqrt(var + bn_eps)
    x = x * params["bn_gamma"].reshape(1, OC, 1, 1) + params["bn_beta"].reshape(1, OC, 1, 1)
    x = jnp.maximum(x, 0.0)
    cat = jnp.concatenate([U, x], axis=1)
    out = jnp.einsum("bihw,oi->bohw", cat, params["out_w"].reshape(C, C + OC))
    return out + params["out_b"].reshape(1, C, 1, 1)


if __name__ == "__main__":
    B, C, H, W = 2, 4, 16, 16
    OC = 8
    LAMBDA = 2.0

    key = jax.random.PRNGKey(0)
    k_u, k_v, k_w, k_g, k_b, k_ow, k_ob = jax.random.split(key, 7)

    U = jax.random.normal(k_u, (B, C, H, W), jnp.float32)
    V = jax.random.normal(k_v, (B, C, H, W), jnp.float32)

    params = {
        # SDConv.weight ~ U(-0.1, 0.1), shape (OC, C, 3, 3)
        "sdc_w": jax.random.uniform(k_w, (OC, C, 3, 3), jnp.float32, -0.1, 0.1),
        # BatchNorm2d affine (deterministic, nontrivial)
        "bn_gamma": 1.0 + 0.1 * jax.random.normal(k_g, (OC,), jnp.float32),
        "bn_beta": 0.1 * jax.random.normal(k_b, (OC,), jnp.float32),
        # Conv2d(C+OC, C, 1) weight/bias
        "out_w": jax.random.uniform(k_ow, (C, C + OC, 1, 1), jnp.float32, -0.3, 0.3),
        "out_b": jax.random.uniform(k_ob, (C,), jnp.float32, -0.1, 0.1),
    }

    out = sdnet_forward(U, V, params, LAMBDA)
    out = jax.block_until_ready(out)

    ref = sdnet_ref(U, V, params, LAMBDA)
    assert out.shape == U.shape
    # Tolerance re-validated for the bf16 MXU operands / bf16 inter-pass
    # activation adopted per the perf review (stats & accumulation stay f32;
    # the BN-renormalised path absorbs bf16 rounding).
    assert jnp.allclose(out, ref, rtol=2e-2, atol=2e-2), (
        f"max abs diff = {float(jnp.max(jnp.abs(out - ref)))}")

    print("KERNEL_OK")
</pallas_src>

<mosaic_0001>
module attributes {stable_mosaic.version = 11 : i64} {
  func.func @_sdconv_stats_kernel(%arg0: i32, %arg1: i32, %arg2: memref<1x1x18x4xf32, #tpu.memory_space<vmem>>, %arg3: memref<1x1x18x4xf32, #tpu.memory_space<vmem>>, %arg4: memref<1x1x18x4xf32, #tpu.memory_space<vmem>>, %arg5: memref<1x1x18x4xf32, #tpu.memory_space<vmem>>, %arg6: memref<1x1x18x4xf32, #tpu.memory_space<vmem>>, %arg7: memref<1x1x18x4xf32, #tpu.memory_space<vmem>>, %arg8: memref<36x8xbf16, #tpu.memory_space<vmem>>, %arg9: memref<16x8xbf16, #tpu.memory_space<vmem>>, %arg10: memref<1x2x8xf32, #tpu.memory_space<vmem>>, %arg11: memref<16x36xf32, #tpu.memory_space<vmem>>) attributes {dimension_semantics = [#tpu.dimension_semantics<parallel>, #tpu.dimension_semantics<parallel>], iteration_bounds = array<i64: 2, 16>, scalar_prefetch = 0 : i64, scratch_operands = 1 : i64, tpu.core_type = #tpu.core_type<tc>, window_params = [{transform_indices = @transform_0, window_bounds = array<i64: 1, 1, 18, 4>}, {transform_indices = @transform_1, window_bounds = array<i64: 1, 1, 18, 4>}, {transform_indices = @transform_2, window_bounds = array<i64: 1, 1, 18, 4>}, {transform_indices = @transform_3, window_bounds = array<i64: 1, 1, 18, 4>}, {transform_indices = @transform_4, window_bounds = array<i64: 1, 1, 18, 4>}, {transform_indices = @transform_5, window_bounds = array<i64: 1, 1, 18, 4>}, {pipeline_mode = #tpu.pipeline_mode<synchronous>, transform_indices = @transform_6, window_bounds = array<i64: 36, 8>}, {transform_indices = @transform_7, window_bounds = array<i64: 16, 8>}, {transform_indices = @transform_8, window_bounds = array<i64: 1, 2, 8>}]} {
    %c0 = arith.constant 0 : index
    %c0_0 = arith.constant 0 : index
    %c0_1 = arith.constant 0 : index
    %c0_2 = arith.constant 0 : index
    %0 = vector.load %arg2[%c0, %c0_0, %c0_1, %c0_2] : memref<1x1x18x4xf32, #tpu.memory_space<vmem>>, vector<1x1x18x4xf32>
    %1 = vector.shape_cast %0 : vector<1x1x18x4xf32> to vector<18x4xf32>
    %c0_3 = arith.constant 0 : index
    %c0_4 = arith.constant 0 : index
    %c0_5 = arith.constant 0 : index
    %c0_6 = arith.constant 0 : index
    %2 = vector.load %arg3[%c0_3, %c0_4, %c0_5, %c0_6] : memref<1x1x18x4xf32, #tpu.memory_space<vmem>>, vector<1x1x18x4xf32>
    %3 = vector.shape_cast %2 : vector<1x1x18x4xf32> to vector<18x4xf32>
    %c0_7 = arith.constant 0 : index
    %c0_8 = arith.constant 0 : index
    %c0_9 = arith.constant 0 : index
    %c0_10 = arith.constant 0 : index
    %4 = vector.load %arg4[%c0_7, %c0_8, %c0_9, %c0_10] : memref<1x1x18x4xf32, #tpu.memory_space<vmem>>, vector<1x1x18x4xf32>
    %5 = vector.shape_cast %4 : vector<1x1x18x4xf32> to vector<18x4xf32>
    %c0_11 = arith.constant 0 : index
    %c0_12 = arith.constant 0 : index
    %c0_13 = arith.constant 0 : index
    %c0_14 = arith.constant 0 : index
    %6 = vector.load %arg5[%c0_11, %c0_12, %c0_13, %c0_14] : memref<1x1x18x4xf32, #tpu.memory_space<vmem>>, vector<1x1x18x4xf32>
    %7 = vector.shape_cast %6 : vector<1x1x18x4xf32> to vector<18x4xf32>
    %c0_15 = arith.constant 0 : index
    %c0_16 = arith.constant 0 : index
    %c0_17 = arith.constant 0 : index
    %c0_18 = arith.constant 0 : index
    %8 = vector.load %arg6[%c0_15, %c0_16, %c0_17, %c0_18] : memref<1x1x18x4xf32, #tpu.memory_space<vmem>>, vector<1x1x18x4xf32>
    %9 = vector.shape_cast %8 : vector<1x1x18x4xf32> to vector<18x4xf32>
    %c0_19 = arith.constant 0 : index
    %c0_20 = arith.constant 0 : index
    %c0_21 = arith.constant 0 : index
    %c0_22 = arith.constant 0 : index
    %10 = vector.load %arg7[%c0_19, %c0_20, %c0_21, %c0_22] : memref<1x1x18x4xf32, #tpu.memory_space<vmem>>, vector<1x1x18x4xf32>
    %11 = vector.shape_cast %10 : vector<1x1x18x4xf32> to vector<18x4xf32>
    %12 = vector.extract_strided_slice %3 {offsets = [1, 0], sizes = [16, 4], strides = [1, 1]} : vector<18x4xf32> to vector<16x4xf32>
    %13 = vector.extract_strided_slice %9 {offsets = [1, 0], sizes = [16, 4], strides = [1, 1]} : vector<18x4xf32> to vector<16x4xf32>
    %14 = vector.extract_strided_slice %1 {offsets = [0, 0], sizes = [16, 4], strides = [1, 1]} : vector<18x4xf32> to vector<16x4xf32>
    %15 = arith.subf %14, %12 : vector<16x4xf32>
    %16 = vector.extract_strided_slice %7 {offsets = [0, 0], sizes = [16, 4], strides = [1, 1]} : vector<18x4xf32> to vector<16x4xf32>
    %17 = arith.subf %16, %13 : vector<16x4xf32>
    %18 = arith.mulf %17, %17 : vector<16x4xf32>
    %cst = arith.constant 2.500000e-01 : f32
    %19 = vector.broadcast %cst : f32 to vector<16x4xf32>
    %20 = arith.mulf %18, %19 : vector<16x4xf32>
    %cst_23 = arith.constant 1.000000e+00 : f32
    %21 = vector.broadcast %cst_23 : f32 to vector<16x4xf32>
    %22 = arith.addf %21, %20 : vector<16x4xf32>
    %23 = math.rsqrt %22 : vector<16x4xf32>
    %24 = arith.mulf %15, %23 : vector<16x4xf32>
    %c0_24 = arith.constant 0 : index
    %c0_25 = arith.constant 0 : index
    %25 = vector.load %arg11[%c0_24, %c0_25] : memref<16x36xf32, #tpu.memory_space<vmem>>, vector<16x4xf32>
    tpu.vector_store %arg11[%c0_24, %c0_25], %24 {strides = array<i32>} : memref<16x36xf32, #tpu.memory_space<vmem>>, vector<16x4xf32>,
    %26 = vector.extract_strided_slice %1 {offsets = [1, 0], sizes = [16, 4], strides = [1, 1]} : vector<18x4xf32> to vector<16x4xf32>
    %27 = arith.subf %26, %12 : vector<16x4xf32>
    %28 = vector.extract_strided_slice %7 {offsets = [1, 0], sizes = [16, 4], strides = [1, 1]} : vector<18x4xf32> to vector<16x4xf32>
    %29 = arith.subf %28, %13 : vector<16x4xf32>
    %30 = arith.mulf %29, %29 : vector<16x4xf32>
    %cst_26 = arith.constant 2.500000e-01 : f32
    %31 = vector.broadcast %cst_26 : f32 to vector<16x4xf32>
    %32 = arith.mulf %30, %31 : vector<16x4xf32>
    %cst_27 = arith.constant 1.000000e+00 : f32
    %33 = vector.broadcast %cst_27 : f32 to vector<16x4xf32>
    %34 = arith.addf %33, %32 : vector<16x4xf32>
    %35 = math.rsqrt %34 : vector<16x4xf32>
    %36 = arith.mulf %27, %35 : vector<16x4xf32>
    %c0_28 = arith.constant 0 : index
    %c4 = arith.constant 4 : index
    %37 = vector.load %arg11[%c0_28, %c4] : memref<16x36xf32, #tpu.memory_space<vmem>>, vector<16x4xf32>
    tpu.vector_store %arg11[%c0_28, %c4], %36 {strides = array<i32>} : memref<16x36xf32, #tpu.memory_space<vmem>>, vector<16x4xf32>,
    %38 = vector.extract_strided_slice %1 {offsets = [2, 0], sizes = [16, 4], strides = [1, 1]} : vector<18x4xf32> to vector<16x4xf32>
    %39 = arith.subf %38, %12 : vector<16x4xf32>
    %40 = vector.extract_strided_slice %7 {offsets = [2, 0], sizes = [16, 4], strides = [1, 1]} : vector<18x4xf32> to vector<16x4xf32>
    %41 = arith.subf %40, %13 : vector<16x4xf32>
    %42 = arith.mulf %41, %41 : vector<16x4xf32>
    %cst_29 = arith.constant 2.500000e-01 : f32
    %43 = vector.broadcast %cst_29 : f32 to vector<16x4xf32>
    %44 = arith.mulf %42, %43 : vector<16x4xf32>
    %cst_30 = arith.constant 1.000000e+00 : f32
    %45 = vector.broadcast %cst_30 : f32 to vector<16x4xf32>
    %46 = arith.addf %45, %44 : vector<16x4xf32>
    %47 = math.rsqrt %46 : vector<16x4xf32>
    %48 = arith.mulf %39, %47 : vector<16x4xf32>
    %c0_31 = arith.constant 0 : index
    %c8 = arith.constant 8 : index
    %49 = vector.load %arg11[%c0_31, %c8] : memref<16x36xf32, #tpu.memory_space<vmem>>, vector<16x4xf32>
    tpu.vector_store %arg11[%c0_31, %c8], %48 {strides = array<i32>} : memref<16x36xf32, #tpu.memory_space<vmem>>, vector<16x4xf32>,
    %50 = vector.extract_strided_slice %3 {offsets = [0, 0], sizes = [16, 4], strides = [1, 1]} : vector<18x4xf32> to vector<16x4xf32>
    %51 = arith.subf %50, %12 : vector<16x4xf32>
    %52 = vector.extract_strided_slice %9 {offsets = [0, 0], sizes = [16, 4], strides = [1, 1]} : vector<18x4xf32> to vector<16x4xf32>
    %53 = arith.subf %52, %13 : vector<16x4xf32>
    %54 = arith.mulf %53, %53 : vector<16x4xf32>
    %cst_32 = arith.constant 2.500000e-01 : f32
    %55 = vector.broadcast %cst_32 : f32 to vector<16x4xf32>
    %56 = arith.mulf %54, %55 : vector<16x4xf32>
    %cst_33 = arith.constant 1.000000e+00 : f32
    %57 = vector.broadcast %cst_33 : f32 to vector<16x4xf32>
    %58 = arith.addf %57, %56 : vector<16x4xf32>
    %59 = math.rsqrt %58 : vector<16x4xf32>
    %60 = arith.mulf %51, %59 : vector<16x4xf32>
    %c0_34 = arith.constant 0 : index
    %c12 = arith.constant 12 : index
    %61 = vector.load %arg11[%c0_34, %c12] : memref<16x36xf32, #tpu.memory_space<vmem>>, vector<16x4xf32>
    tpu.vector_store %arg11[%c0_34, %c12], %60 {strides = array<i32>} : memref<16x36xf32, #tpu.memory_space<vmem>>, vector<16x4xf32>,
    %62 = vector.extract_strided_slice %3 {offsets = [1, 0], sizes = [16, 4], strides = [1, 1]} : vector<18x4xf32> to vector<16x4xf32>
    %63 = arith.subf %62, %12 : vector<16x4xf32>
    %64 = vector.extract_strided_slice %9 {offsets = [1, 0], sizes = [16, 4], strides = [1, 1]} : vector<18x4xf32> to vector<16x4xf32>
    %65 = arith.subf %64, %13 : vector<16x4xf32>
    %66 = arith.mulf %65, %65 : vector<16x4xf32>
    %cst_35 = arith.constant 2.500000e-01 : f32
    %67 = vector.broadcast %cst_35 : f32 to vector<16x4xf32>
    %68 = arith.mulf %66, %67 : vector<16x4xf32>
    %cst_36 = arith.constant 1.000000e+00 : f32
    %69 = vector.broadcast %cst_36 : f32 to vector<16x4xf32>
    %70 = arith.addf %69, %68 : vector<16x4xf32>
    %71 = math.rsqrt %70 : vector<16x4xf32>
    %72 = arith.mulf %63, %71 : vector<16x4xf32>
    %c0_37 = arith.constant 0 : index
    %c16 = arith.constant 16 : index
    %73 = vector.load %arg11[%c0_37, %c16] : memref<16x36xf32, #tpu.memory_space<vmem>>, vector<16x4xf32>
    tpu.vector_store %arg11[%c0_37, %c16], %72 {strides = array<i32>} : memref<16x36xf32, #tpu.memory_space<vmem>>, vector<16x4xf32>,
    %74 = vector.extract_strided_slice %3 {offsets = [2, 0], sizes = [16, 4], strides = [1, 1]} : vector<18x4xf32> to vector<16x4xf32>
    %75 = arith.subf %74, %12 : vector<16x4xf32>
    %76 = vector.extract_strided_slice %9 {offsets = [2, 0], sizes = [16, 4], strides = [1, 1]} : vector<18x4xf32> to vector<16x4xf32>
    %77 = arith.subf %76, %13 : vector<16x4xf32>
    %78 = arith.mulf %77, %77 : vector<16x4xf32>
    %cst_38 = arith.constant 2.500000e-01 : f32
    %79 = vector.broadcast %cst_38 : f32 to vector<16x4xf32>
    %80 = arith.mulf %78, %79 : vector<16x4xf32>
    %cst_39 = arith.constant 1.000000e+00 : f32
    %81 = vector.broadcast %cst_39 : f32 to vector<16x4xf32>
    %82 = arith.addf %81, %80 : vector<16x4xf32>
    %83 = math.rsqrt %82 : vector<16x4xf32>
    %84 = arith.mulf %75, %83 : vector<16x4xf32>
    %c0_40 = arith.constant 0 : index
    %c20 = arith.constant 20 : index
    %85 = vector.load %arg11[%c0_40, %c20] : memref<16x36xf32, #tpu.memory_space<vmem>>, vector<16x4xf32>
    tpu.vector_store %arg11[%c0_40, %c20], %84 {strides = array<i32>} : memref<16x36xf32, #tpu.memory_space<vmem>>, vector<16x4xf32>,
    %86 = vector.extract_strided_slice %5 {offsets = [0, 0], sizes = [16, 4], strides = [1, 1]} : vector<18x4xf32> to vector<16x4xf32>
    %87 = arith.subf %86, %12 : vector<16x4xf32>
    %88 = vector.extract_strided_slice %11 {offsets = [0, 0], sizes = [16, 4], strides = [1, 1]} : vector<18x4xf32> to vector<16x4xf32>
    %89 = arith.subf %88, %13 : vector<16x4xf32>
    %90 = arith.mulf %89, %89 : vector<16x4xf32>
    %cst_41 = arith.constant 2.500000e-01 : f32
    %91 = vector.broadcast %cst_41 : f32 to vector<16x4xf32>
    %92 = arith.mulf %90, %91 : vector<16x4xf32>
    %cst_42 = arith.constant 1.000000e+00 : f32
    %93 = vector.broadcast %cst_42 : f32 to vector<16x4xf32>
    %94 = arith.addf %93, %92 : vector<16x4xf32>
    %95 = math.rsqrt %94 : vector<16x4xf32>
    %96 = arith.mulf %87, %95 : vector<16x4xf32>
    %c0_43 = arith.constant 0 : index
    %c24 = arith.constant 24 : index
    %97 = vector.load %arg11[%c0_43, %c24] : memref<16x36xf32, #tpu.memory_space<vmem>>, vector<16x4xf32>
    tpu.vector_store %arg11[%c0_43, %c24], %96 {strides = array<i32>} : memref<16x36xf32, #tpu.memory_space<vmem>>, vector<16x4xf32>,
    %98 = vector.extract_strided_slice %5 {offsets = [1, 0], sizes = [16, 4], strides = [1, 1]} : vector<18x4xf32> to vector<16x4xf32>
    %99 = arith.subf %98, %12 : vector<16x4xf32>
    %100 = vector.extract_strided_slice %11 {offsets = [1, 0], sizes = [16, 4], strides = [1, 1]} : vector<18x4xf32> to vector<16x4xf32>
    %101 = arith.subf %100, %13 : vector<16x4xf32>
    %102 = arith.mulf %101, %101 : vector<16x4xf32>
    %cst_44 = arith.constant 2.500000e-01 : f32
    %103 = vector.broadcast %cst_44 : f32 to vector<16x4xf32>
    %104 = arith.mulf %102, %103 : vector<16x4xf32>
    %cst_45 = arith.constant 1.000000e+00 : f32
    %105 = vector.broadcast %cst_45 : f32 to vector<16x4xf32>
    %106 = arith.addf %105, %104 : vector<16x4xf32>
    %107 = math.rsqrt %106 : vector<16x4xf32>
    %108 = arith.mulf %99, %107 : vector<16x4xf32>
    %c0_46 = arith.constant 0 : index
    %c28 = arith.constant 28 : index
    %109 = vector.load %arg11[%c0_46, %c28] : memref<16x36xf32, #tpu.memory_space<vmem>>, vector<16x4xf32>
    tpu.vector_store %arg11[%c0_46, %c28], %108 {strides = array<i32>} : memref<16x36xf32, #tpu.memory_space<vmem>>, vector<16x4xf32>,
    %110 = vector.extract_strided_slice %5 {offsets = [2, 0], sizes = [16, 4], strides = [1, 1]} : vector<18x4xf32> to vector<16x4xf32>
    %111 = arith.subf %110, %12 : vector<16x4xf32>
    %112 = vector.extract_strided_slice %11 {offsets = [2, 0], sizes = [16, 4], strides = [1, 1]} : vector<18x4xf32> to vector<16x4xf32>
    %113 = arith.subf %112, %13 : vector<16x4xf32>
    %114 = arith.mulf %113, %113 : vector<16x4xf32>
    %cst_47 = arith.constant 2.500000e-01 : f32
    %115 = vector.broadcast %cst_47 : f32 to vector<16x4xf32>
    %116 = arith.mulf %114, %115 : vector<16x4xf32>
    %cst_48 = arith.constant 1.000000e+00 : f32
    %117 = vector.broadcast %cst_48 : f32 to vector<16x4xf32>
    %118 = arith.addf %117, %116 : vector<16x4xf32>
    %119 = math.rsqrt %118 : vector<16x4xf32>
    %120 = arith.mulf %111, %119 : vector<16x4xf32>
    %c0_49 = arith.constant 0 : index
    %c32 = arith.constant 32 : index
    %121 = vector.load %arg11[%c0_49, %c32] : memref<16x36xf32, #tpu.memory_space<vmem>>, vector<16x4xf32>
    tpu.vector_store %arg11[%c0_49, %c32], %120 {strides = array<i32>} : memref<16x36xf32, #tpu.memory_space<vmem>>, vector<16x4xf32>,
    %c0_50 = arith.constant 0 : index
    %c0_51 = arith.constant 0 : index
    %122 = vector.load %arg11[%c0_50, %c0_51] : memref<16x36xf32, #tpu.memory_space<vmem>>, vector<16x36xf32>
    %123 = arith.truncf %122 : vector<16x36xf32> to vector<16x36xbf16>
    %c0_52 = arith.constant 0 : index
    %c0_53 = arith.constant 0 : index
    %124 = vector.load %arg8[%c0_52, %c0_53] : memref<36x8xbf16, #tpu.memory_space<vmem>>, vector<36x8xbf16>
    %cst_54 = arith.constant dense<0.000000e+00> : vector<16x8xf32>
    %125 = tpu.matmul %123, %124, %cst_54 {dimension_numbers = #tpu.dot_dimension_numbers<[1], [0], [0], [1], [0, 0, 1, 1], [], []>} : vector<16x36xbf16>, vector<36x8xbf16>, vector<16x8xf32> -> vector<16x8xf32>
    %126 = arith.truncf %125 : vector<16x8xf32> to vector<16x8xbf16>
    %c0_55 = arith.constant 0 : index
    %c0_56 = arith.constant 0 : index
    %127 = vector.load %arg9[%c0_55, %c0_56] : memref<16x8xbf16, #tpu.memory_space<vmem>>, vector<16x8xbf16>
    tpu.vector_store %arg9[%c0_55, %c0_56], %126 {strides = array<i32>} : memref<16x8xbf16, #tpu.memory_space<vmem>>, vector<16x8xbf16>,
    %cst_57 = arith.constant dense<0.000000e+00> : vector<8xf32>
    %128 = vector.multi_reduction <add>, %125, %cst_57 [0] : vector<16x8xf32> to vector<8xf32>
    %129 = vector.shape_cast %128 : vector<8xf32> to vector<1x8xf32>
    %c0_58 = arith.constant 0 : index
    %c0_59 = arith.constant 0 : index
    %c0_60 = arith.constant 0 : index
    %130 = vector.load %arg10[%c0_58, %c0_59, %c0_60] : memref<1x2x8xf32, #tpu.memory_space<vmem>>, vector<1x1x8xf32>
    %131 = vector.shape_cast %130 : vector<1x1x8xf32> to vector<1x8xf32>
    %132 = vector.shape_cast %129 : vector<1x8xf32> to vector<1x1x8xf32>
    tpu.vector_store %arg10[%c0_58, %c0_59, %c0_60], %132 {strides = array<i32>} : memref<1x2x8xf32, #tpu.memory_space<vmem>>, vector<1x1x8xf32>,
    %133 = arith.mulf %125, %125 : vector<16x8xf32>
    %cst_61 = arith.constant dense<0.000000e+00> : vector<8xf32>
    %134 = vector.multi_reduction <add>, %133, %cst_61 [0] : vector<16x8xf32> to vector<8xf32>
    %135 = vector.shape_cast %134 : vector<8xf32> to vector<1x8xf32>
    %c0_62 = arith.constant 0 : index
    %c1 = arith.constant 1 : index
    %c0_63 = arith.constant 0 : index
    %136 = vector.load %arg10[%c0_62, %c1, %c0_63] : memref<1x2x8xf32, #tpu.memory_space<vmem>>, vector<1x1x8xf32>
    %137 = vector.shape_cast %136 : vector<1x1x8xf32> to vector<1x8xf32>
    %138 = vector.shape_cast %135 : vector<1x8xf32> to vector<1x1x8xf32>
    tpu.vector_store %arg10[%c0_62, %c1, %c0_63], %138 {strides = array<i32>} : memref<1x2x8xf32, #tpu.memory_space<vmem>>, vector<1x1x8xf32>,
    return
  }
  func.func @transform_0(%arg0: i32, %arg1: i32) -> (i32, i32, i32, i32) {
    %c0_i32 = arith.constant 0 : i32
    %0 = arith.addi %arg1, %c0_i32 : i32
    %c0_i32_0 = arith.constant 0 : i32
    %c0_i32_1 = arith.constant 0 : i32
    %c0_i32_2 = arith.constant 0 : i32
    return %arg0, %0, %c0_i32_0, %c0_i32_1 : i32, i32, i32, i32
  }
  func.func @transform_1(%arg0: i32, %arg1: i32) -> (i32, i32, i32, i32) {
    %c1_i32 = arith.constant 1 : i32
    %0 = arith.addi %arg1, %c1_i32 : i32
    %c0_i32 = arith.constant 0 : i32
    %c0_i32_0 = arith.constant 0 : i32
    %c0_i32_1 = arith.constant 0 : i32
    return %arg0, %0, %c0_i32, %c0_i32_0 : i32, i32, i32, i32
  }
  func.func @transform_2(%arg0: i32, %arg1: i32) -> (i32, i32, i32, i32) {
    %c2_i32 = arith.constant 2 : i32
    %0 = arith.addi %arg1, %c2_i32 : i32
    %c0_i32 = arith.constant 0 : i32
    %c0_i32_0 = arith.constant 0 : i32
    %c0_i32_1 = arith.constant 0 : i32
    return %arg0, %0, %c0_i32, %c0_i32_0 : i32, i32, i32, i32
  }
  func.func @transform_3(%arg0: i32, %arg1: i32) -> (i32, i32, i32, i32) {
    %c0_i32 = arith.constant 0 : i32
    %0 = arith.addi %arg1, %c0_i32 : i32
    %c0_i32_0 = arith.constant 0 : i32
    %c0_i32_1 = arith.constant 0 : i32
    %c0_i32_2 = arith.constant 0 : i32
    return %arg0, %0, %c0_i32_0, %c0_i32_1 : i32, i32, i32, i32
  }
  func.func @transform_4(%arg0: i32, %arg1: i32) -> (i32, i32, i32, i32) {
    %c1_i32 = arith.constant 1 : i32
    %0 = arith.addi %arg1, %c1_i32 : i32
    %c0_i32 = arith.constant 0 : i32
    %c0_i32_0 = arith.constant 0 : i32
    %c0_i32_1 = arith.constant 0 : i32
    return %arg0, %0, %c0_i32, %c0_i32_0 : i32, i32, i32, i32
  }
  func.func @transform_5(%arg0: i32, %arg1: i32) -> (i32, i32, i32, i32) {
    %c2_i32 = arith.constant 2 : i32
    %0 = arith.addi %arg1, %c2_i32 : i32
    %c0_i32 = arith.constant 0 : i32
    %c0_i32_0 = arith.constant 0 : i32
    %c0_i32_1 = arith.constant 0 : i32
    return %arg0, %0, %c0_i32, %c0_i32_0 : i32, i32, i32, i32
  }
  func.func @transform_6(%arg0: i32, %arg1: i32) -> (i32, i32) {
    %c0_i32 = arith.constant 0 : i32
    %c0_i32_0 = arith.constant 0 : i32
    %c0_i32_1 = arith.constant 0 : i32
    return %c0_i32, %c0_i32_0 : i32, i32
  }
  func.func @transform_7(%arg0: i32, %arg1: i32) -> (i32, i32) {
    %c16_i32 = arith.constant 16 : i32
    %0 = arith.muli %arg0, %c16_i32 : i32
    %1 = arith.addi %0, %arg1 : i32
    %c0_i32 = arith.constant 0 : i32
    %c0_i32_0 = arith.constant 0 : i32
    return %1, %c0_i32 : i32, i32
  }
  func.func @transform_8(%arg0: i32, %arg1: i32) -> (i32, i32, i32) {
    %c16_i32 = arith.constant 16 : i32
    %0 = arith.muli %arg0, %c16_i32 : i32
    %1 = arith.addi %0, %arg1 : i32
    %c0_i32 = arith.constant 0 : i32
    %c0_i32_0 = arith.constant 0 : i32
    %c0_i32_1 = arith.constant 0 : i32
    return %1, %c0_i32, %c0_i32_0 : i32, i32, i32
  }
}

</mosaic_0001>

<llo_original>
// kernel: tpu_custom_call.1
$region0: #{tpu_custom_call.1}
  #allocation0 [shape = 'u32[]', space=smem, size = 0x4, offset = 0x4, fixed_abs, tag = 'smem constant byte address 0x4 - core index']
  #allocation1 [shape = 'u32[144,128]{1,0:T(1,128)}', space=vmem, size = 0x12000, scoped, tag = 'internal scratch']
  #allocation2 [shape = 'f32[16,36]{1,0:T(8,128)}', space=vmem, size = 0x2000, scoped, tag = 'scratch operand']
  %s0 = inlined_call_operand.vmem [shape: f32[2,18,18,4], index: 0, kind: input, shape index: {}]
  %s1 = inlined_call_operand.vmem [shape: f32[2,18,18,4], index: 1, kind: input, shape index: {}]
  %s2 = inlined_call_operand.vmem [shape: f32[2,18,18,4], index: 2, kind: input, shape index: {}]
  %s3 = inlined_call_operand.vmem [shape: f32[2,18,18,4], index: 3, kind: input, shape index: {}]
  %s4 = inlined_call_operand.vmem [shape: f32[2,18,18,4], index: 4, kind: input, shape index: {}]
  %s5 = inlined_call_operand.vmem [shape: f32[2,18,18,4], index: 5, kind: input, shape index: {}]
  %s6 = inlined_call_operand.vmem [shape: bf16[36,8], index: 6, kind: input, shape index: {}]
  %s7 = inlined_call_operand.vmem [shape: bf16[512,8], index: 7, kind: output, shape index: {0}]
  %s8 = inlined_call_operand.vmem [shape: f32[32,2,8], index: 8, kind: output, shape index: {1}]
  %9 = xla_tuple %s7, %s8
  %s10 = sld [smem:[#allocation0]]
  $region69: #{tpu_custom_call.1} parent=0
    _
  %s12 = ssub.s32 1, %s10
  %s13 = scalar_select 0, %s12, %s10
  loop: start=0, step=1, limit=34
  $region2: #{tpu_custom_call.1} parent=0 // loop_pre_header
    _
  $region3: #{tpu_custom_call.1} parent=0 // loop_header
    %s15 = sphi 0, %s19
    %p16 = scmp.ge.s32.totalorder %s15, 34
    %s22 = sphi 0, %s34
    %s23 = sphi 0, %s30
    %s24 = sphi 0, %s22
    %s25 = sphi 0, %s23
    %s26 = sphi 0, %s24
    %s27 = sphi 0, %s25
    %s39 = sphi 0, %s41
    %s42 = sphi 0, %s39
    %s43 = sphi 0, %s42
    %s59 = sphi 0, %s43
    %s69 = sphi 0, %s71
    %s72 = sphi 0, %s69
    %s73 = sphi 0, %s72
    %s89 = sphi 0, %s73
    %s99 = sphi 0, %s101
    %s102 = sphi 0, %s99
    %s103 = sphi 0, %s102
    %s119 = sphi 0, %s103
    %s127 = sphi 0, %s129
    %s130 = sphi 0, %s127
    %s131 = sphi 0, %s130
    %s147 = sphi 0, %s131
    %s157 = sphi 0, %s159
    %s160 = sphi 0, %s157
    %s161 = sphi 0, %s160
    %s177 = sphi 0, %s161
    %s187 = sphi 0, %s189
    %s190 = sphi 0, %s187
    %s191 = sphi 0, %s190
    %s207 = sphi 0, %s191
    %s211 = sphi 0, %s211
    %s213 = sphi 0, %s211
    %s214 = sphi 0, %s213
    %s228 = sphi 0, %s214
    %s238 = sphi 0, %s240
    %s241 = sphi 0, %s238
    %s242 = sphi 0, %s241
    %s258 = sphi 0, %s242
    %s268 = sphi 0, %s270
    %s271 = sphi 0, %s268
    %s272 = sphi 0, %s271
    %s288 = sphi 0, %s272
  $region4: #{tpu_custom_call.1} parent=0 // loop_header_branch
    %18 = sbr.rel (%p16) target = $region8
  $region5: #{tpu_custom_call.1} parent=0 // loop_body
    %s20 = ssub.s32 %s15, 1
    %s21 = ssub.s32 %s15, 2
    %s28 = sadd.s32 1, %s23
    %p29 = scmp.ge.s32.totalorder %s28, 16
    %s30 = scalar_select %p29, 0, %s28
    %s31 = sadd.s32 1, %s22
    %s32 = scalar_select %p29, %s31, %s22
    %p33 = scmp.ge.s32.totalorder %s32, 2
    %s34 = scalar_select %p33, 0, %s32
    %s35 = ssub.s32 %s22, %s34
    %s36 = ssub.s32 %s23, %s30
    %s37 = sor.u32 %s35, %s36
    %p38 = scmp.eq.s32.totalorder %s37, 0
    %s40 = sadd.s32 %s39, 1
    %s41 = scalar_select %p38, %s39, %s40
    %p44 = pneg %p38
    %p45 = scmp.eq.s32.totalorder %s15, 31
    %p46 = por %p44, %p45
    %p47 = scmp.ne.s32.totalorder %s39, %s42
    %p48 = scmp.eq.s32.totalorder %s15, 0
    %p49 = por %p47, %p48
    %p50 = scmp.ne.s32.totalorder %s39, %s42
    %p51 = scmp.eq.s32.totalorder %s20, 31
    %p52 = por %p50, %p51
    %p53 = scmp.ne.s32.totalorder %s42, %s43
    %p54 = scmp.eq.s32.totalorder %s20, 0
    %p55 = por %p53, %p54
    %p56 = scmp.ne.s32.totalorder %s42, %s43
    %p57 = scmp.eq.s32.totalorder %s21, 31
    %p58 = por %p56, %p57
    %p60 = scmp.ne.s32.totalorder %s43, %s59
    %p61 = scmp.eq.s32.totalorder %s21, 0
    %p62 = por %p60, %p61
    %s63 = sadd.s32 %s23, 1
    %s64 = sadd.s32 %s30, 1
    %s65 = ssub.s32 %s22, %s34
    %s66 = ssub.s32 %s63, %s64
    %s67 = sor.u32 %s65, %s66
    %p68 = scmp.eq.s32.totalorder %s67, 0
    %s70 = sadd.s32 %s69, 1
    %s71 = scalar_select %p68, %s69, %s70
    %p74 = pneg %p68
    %p75 = scmp.eq.s32.totalorder %s15, 31
    %p76 = por %p74, %p75
    %p77 = scmp.ne.s32.totalorder %s69, %s72
    %p78 = scmp.eq.s32.totalorder %s15, 0
    %p79 = por %p77, %p78
    %p80 = scmp.ne.s32.totalorder %s69, %s72
    %p81 = scmp.eq.s32.totalorder %s20, 31
    %p82 = por %p80, %p81
    %p83 = scmp.ne.s32.totalorder %s72, %s73
    %p84 = scmp.eq.s32.totalorder %s20, 0
    %p85 = por %p83, %p84
    %p86 = scmp.ne.s32.totalorder %s72, %s73
    %p87 = scmp.eq.s32.totalorder %s21, 31
    %p88 = por %p86, %p87
    %p90 = scmp.ne.s32.totalorder %s73, %s89
    %p91 = scmp.eq.s32.totalorder %s21, 0
    %p92 = por %p90, %p91
    %s93 = sadd.s32 %s23, 2
    %s94 = sadd.s32 %s30, 2
    %s95 = ssub.s32 %s22, %s34
    %s96 = ssub.s32 %s93, %s94
    %s97 = sor.u32 %s95, %s96
    %p98 = scmp.eq.s32.totalorder %s97, 0
    %s100 = sadd.s32 %s99, 1
    %s101 = scalar_select %p98, %s99, %s100
    %p104 = pneg %p98
    %p105 = scmp.eq.s32.totalorder %s15, 31
    %p106 = por %p104, %p105
    %p107 = scmp.ne.s32.totalorder %s99, %s102
    %p108 = scmp.eq.s32.totalorder %s15, 0
    %p109 = por %p107, %p108
    %p110 = scmp.ne.s32.totalorder %s99, %s102
    %p111 = scmp.eq.s32.totalorder %s20, 31
    %p112 = por %p110, %p111
    %p113 = scmp.ne.s32.totalorder %s102, %s103
    %p114 = scmp.eq.s32.totalorder %s20, 0
    %p115 = por %p113, %p114
    %p116 = scmp.ne.s32.totalorder %s102, %s103
    %p117 = scmp.eq.s32.totalorder %s21, 31
    %p118 = por %p116, %p117
    %p120 = scmp.ne.s32.totalorder %s103, %s119
    %p121 = scmp.eq.s32.totalorder %s21, 0
    %p122 = por %p120, %p121
    %s123 = ssub.s32 %s22, %s34
    %s124 = ssub.s32 %s23, %s30
    %s125 = sor.u32 %s123, %s124
    %p126 = scmp.eq.s32.totalorder %s125, 0
    %s128 = sadd.s32 %s127, 1
    %s129 = scalar_select %p126, %s127, %s128
    %p132 = pneg %p126
    %p133 = scmp.eq.s32.totalorder %s15, 31
    %p134 = por %p132, %p133
    %p135 = scmp.ne.s32.totalorder %s127, %s130
    %p136 = scmp.eq.s32.totalorder %s15, 0
    %p137 = por %p135, %p136
    %p138 = scmp.ne.s32.totalorder %s127, %s130
    %p139 = scmp.eq.s32.totalorder %s20, 31
    %p140 = por %p138, %p139
    %p141 = scmp.ne.s32.totalorder %s130, %s131
    %p142 = scmp.eq.s32.totalorder %s20, 0
    %p143 = por %p141, %p142
    %p144 = scmp.ne.s32.totalorder %s130, %s131
    %p145 = scmp.eq.s32.totalorder %s21, 31
    %p146 = por %p144, %p145
    %p148 = scmp.ne.s32.totalorder %s131, %s147
    %p149 = scmp.eq.s32.totalorder %s21, 0
    %p150 = por %p148, %p149
    %s151 = sadd.s32 %s23, 1
    %s152 = sadd.s32 %s30, 1
    %s153 = ssub.s32 %s22, %s34
    %s154 = ssub.s32 %s151, %s152
    %s155 = sor.u32 %s153, %s154
    %p156 = scmp.eq.s32.totalorder %s155, 0
    %s158 = sadd.s32 %s157, 1
    %s159 = scalar_select %p156, %s157, %s158
    %p162 = pneg %p156
    %p163 = scmp.eq.s32.totalorder %s15, 31
    %p164 = por %p162, %p163
    %p165 = scmp.ne.s32.totalorder %s157, %s160
    %p166 = scmp.eq.s32.totalorder %s15, 0
    %p167 = por %p165, %p166
    %p168 = scmp.ne.s32.totalorder %s157, %s160
    %p169 = scmp.eq.s32.totalorder %s20, 31
    %p170 = por %p168, %p169
    %p171 = scmp.ne.s32.totalorder %s160, %s161
    %p172 = scmp.eq.s32.totalorder %s20, 0
    %p173 = por %p171, %p172
    %p174 = scmp.ne.s32.totalorder %s160, %s161
    %p175 = scmp.eq.s32.totalorder %s21, 31
    %p176 = por %p174, %p175
    %p178 = scmp.ne.s32.totalorder %s161, %s177
    %p179 = scmp.eq.s32.totalorder %s21, 0
    %p180 = por %p178, %p179
    %s181 = sadd.s32 %s23, 2
    %s182 = sadd.s32 %s30, 2
    %s183 = ssub.s32 %s22, %s34
    %s184 = ssub.s32 %s181, %s182
    %s185 = sor.u32 %s183, %s184
    %p186 = scmp.eq.s32.totalorder %s185, 0
    %s188 = sadd.s32 %s187, 1
    %s189 = scalar_select %p186, %s187, %s188
    %p192 = pneg %p186
    %p193 = scmp.eq.s32.totalorder %s15, 31
    %p194 = por %p192, %p193
    %p195 = scmp.ne.s32.totalorder %s187, %s190
    %p196 = scmp.eq.s32.totalorder %s15, 0
    %p197 = por %p195, %p196
    %p198 = scmp.ne.s32.totalorder %s187, %s190
    %p199 = scmp.eq.s32.totalorder %s20, 31
    %p200 = por %p198, %p199
    %p201 = scmp.ne.s32.totalorder %s190, %s191
    %p202 = scmp.eq.s32.totalorder %s20, 0
    %p203 = por %p201, %p202
    %p204 = scmp.ne.s32.totalorder %s190, %s191
    %p205 = scmp.eq.s32.totalorder %s21, 31
    %p206 = por %p204, %p205
    %p208 = scmp.ne.s32.totalorder %s191, %s207
    %p209 = scmp.eq.s32.totalorder %s21, 0
    %p210 = por %p208, %p209
    %s212 = sadd.s32 %s211, 1
    %p215 = scmp.eq.s32.totalorder %s15, 31
    %p216 = scmp.ne.s32.totalorder %s211, %s213
    %p217 = scmp.eq.s32.totalorder %s15, 0
    %p218 = por %p216, %p217
    %p219 = scmp.ne.s32.totalorder %s211, %s213
    %p220 = scmp.eq.s32.totalorder %s20, 31
    %p221 = por %p219, %p220
    %p222 = scmp.ne.s32.totalorder %s213, %s214
    %p223 = scmp.eq.s32.totalorder %s20, 0
    %p224 = por %p222, %p223
    %p225 = scmp.ne.s32.totalorder %s213, %s214
    %p226 = scmp.eq.s32.totalorder %s21, 31
    %p227 = por %p225, %p226
    %p229 = scmp.ne.s32.totalorder %s214, %s228
    %p230 = scmp.eq.s32.totalorder %s21, 0
    %p231 = por %p229, %p230
    %s232 = smul.u32 %s22, 16
    %s233 = sadd.s32 %s232, %s23
    %s234 = smul.u32 %s34, 16
    %s235 = sadd.s32 %s234, %s30
    %s236 = ssub.s32 %s233, %s235
    %p237 = scmp.eq.s32.totalorder %s236, 0
    %s239 = sadd.s32 %s238, 1
    %s240 = scalar_select %p237, %s238, %s239
    %p243 = pneg %p237
    %p244 = scmp.eq.s32.totalorder %s15, 31
    %p245 = por %p243, %p244
    %p246 = scmp.ne.s32.totalorder %s238, %s241
    %p247 = scmp.eq.s32.totalorder %s15, 0
    %p248 = por %p246, %p247
    %p249 = scmp.ne.s32.totalorder %s238, %s241
    %p250 = scmp.eq.s32.totalorder %s20, 31
    %p251 = por %p249, %p250
    %p252 = scmp.ne.s32.totalorder %s241, %s242
    %p253 = scmp.eq.s32.totalorder %s20, 0
    %p254 = por %p252, %p253
    %p255 = scmp.ne.s32.totalorder %s241, %s242
    %p256 = scmp.eq.s32.totalorder %s21, 31
    %p257 = por %p255, %p256
    %p259 = scmp.ne.s32.totalorder %s242, %s258
    %p260 = scmp.eq.s32.totalorder %s21, 0
    %p261 = por %p259, %p260
    %s262 = smul.u32 %s22, 16
    %s263 = sadd.s32 %s262, %s23
    %s264 = smul.u32 %s34, 16
    %s265 = sadd.s32 %s264, %s30
    %s266 = ssub.s32 %s263, %s265
    %p267 = scmp.eq.s32.totalorder %s266, 0
    %s269 = sadd.s32 %s268, 1
    %s270 = scalar_select %p267, %s268, %s269
    %p273 = pneg %p267
    %p274 = scmp.eq.s32.totalorder %s15, 31
    %p275 = por %p273, %p274
    %p276 = scmp.ne.s32.totalorder %s268, %s271
    %p277 = scmp.eq.s32.totalorder %s15, 0
    %p278 = por %p276, %p277
    %p279 = scmp.ne.s32.totalorder %s268, %s271
    %p280 = scmp.eq.s32.totalorder %s20, 31
    %p281 = por %p279, %p280
    %p282 = scmp.ne.s32.totalorder %s271, %s272
    %p283 = scmp.eq.s32.totalorder %s20, 0
    %p284 = por %p282, %p283
    %p285 = scmp.ne.s32.totalorder %s271, %s272
    %p286 = scmp.eq.s32.totalorder %s21, 31
    %p287 = por %p285, %p286
    %p289 = scmp.ne.s32.totalorder %s272, %s288
    %p290 = scmp.eq.s32.totalorder %s21, 0
    %p291 = por %p289, %p290
    %p292 = scmp.le.s32.totalorder 1, %s15
    %p293 = scmp.lt.s32.totalorder %s15, 33
    %p294 = pnand %p292, %p293
    %p295 = pneg %p294
    // Predicated region
    $region9: #{tpu_custom_call.1} parent=5 // pred_check
      _
    $region10: #{tpu_custom_call.1} parent=5 // pred_check_branch
      %297 = sbr.rel (%p294) target = $region12
    $region11: #{tpu_custom_call.1} parent=5 // pred_region
      %s298 = ssub.s32 %s15, 1
      // Predicated region
      $region13: #{tpu_custom_call.1} parent=11 // pred_check
        %p299 = pneg %p224
      $region14: #{tpu_custom_call.1} parent=11 // pred_check_branch
        %301 = sbr.rel (%p299) target = $region16
      $region15: #{tpu_custom_call.1} parent=11 // pred_region
        _
      $region16: #{tpu_custom_call.1} parent=11 // pred_fallthru
        _
    $region12: #{tpu_custom_call.1} parent=5 // pred_fallthru
      _
    %p302 = scmp.lt.s32.totalorder %s15, 32
    // Predicated region
    $region17: #{tpu_custom_call.1} parent=5 // pred_check
      %p303 = pneg %p302
    $region18: #{tpu_custom_call.1} parent=5 // pred_check_branch
      %305 = sbr.rel (%p303) target = $region20
    $region19: #{tpu_custom_call.1} parent=5 // pred_region
      // Predicated region
      $region21: #{tpu_custom_call.1} parent=19 // pred_check
        %p306 = pneg %p49
      $region22: #{tpu_custom_call.1} parent=19 // pred_check_branch
        %308 = sbr.rel (%p306) target = $region24
      $region23: #{tpu_custom_call.1} parent=19 // pred_region
        %p309 = scmp.lt.s32.totalorder %s22, 1
        %s310 = scalar_select %p309, %s22, 1
        %p311 = scmp.lt.s32.totalorder %s23, 17
        %s312 = scalar_select %p311, %s23, 17
        %s313 = smul.addr %s312, 3
        %s314 = smul.addr %s310, 54
        %s315 = sadd.s32 %s313, %s314
        %s316 = smul.addr %s315, 8
        %s317 = scalar_lea.vmem %s0, %s316
      $region24: #{tpu_custom_call.1} parent=19 // pred_fallthru
        _
      // Predicated region
      $region25: #{tpu_custom_call.1} parent=19 // pred_check
        %p318 = pneg %p79
      $region26: #{tpu_custom_call.1} parent=19 // pred_check_branch
        %320 = sbr.rel (%p318) target = $region28
      $region27: #{tpu_custom_call.1} parent=19 // pred_region
        %s321 = sadd.s32 %s23, 1
        %p322 = scmp.lt.s32.totalorder %s22, 1
        %s323 = scalar_select %p322, %s22, 1
        %p324 = scmp.lt.s32.totalorder %s321, 17
        %s325 = scalar_select %p324, %s321, 17
        %s326 = smul.addr %s325, 3
        %s327 = smul.addr %s323, 54
        %s328 = sadd.s32 %s326, %s327
        %s329 = smul.addr %s328, 8
        %s330 = scalar_lea.vmem %s1, %s329
        %s331 = sadd.s32 %s23, 1
      $region28: #{tpu_custom_call.1} parent=19 // pred_fallthru
        _
      // Predicated region
      $region29: #{tpu_custom_call.1} parent=19 // pred_check
        %p332 = pneg %p109
      $region30: #{tpu_custom_call.1} parent=19 // pred_check_branch
        %334 = sbr.rel (%p332) target = $region32
      $region31: #{tpu_custom_call.1} parent=19 // pred_region
        %s335 = sadd.s32 %s23, 2
        %p336 = scmp.lt.s32.totalorder %s22, 1
        %s337 = scalar_select %p336, %s22, 1
        %p338 = scmp.lt.s32.totalorder %s335, 17
        %s339 = scalar_select %p338, %s335, 17
        %s340 = smul.addr %s339, 3
        %s341 = smul.addr %s337, 54
        %s342 = sadd.s32 %s340, %s341
        %s343 = smul.addr %s342, 8
        %s344 = scalar_lea.vmem %s2, %s343
        %s345 = sadd.s32 %s23, 2
      $region32: #{tpu_custom_call.1} parent=19 // pred_fallthru
        _
      // Predicated region
      $region33: #{tpu_custom_call.1} parent=19 // pred_check
        %p346 = pneg %p137
      $region34: #{tpu_custom_call.1} parent=19 // pred_check_branch
        %348 = sbr.rel (%p346) target = $region36
      $region35: #{tpu_custom_call.1} parent=19 // pred_region
        %p349 = scmp.lt.s32.totalorder %s22, 1
        %s350 = scalar_select %p349, %s22, 1
        %p351 = scmp.lt.s32.totalorder %s23, 17
        %s352 = scalar_select %p351, %s23, 17
        %s353 = smul.addr %s352, 3
        %s354 = smul.addr %s350, 54
        %s355 = sadd.s32 %s353, %s354
        %s356 = smul.addr %s355, 8
        %s357 = scalar_lea.vmem %s3, %s356
      $region36: #{tpu_custom_call.1} parent=19 // pred_fallthru
        _
      // Predicated region
      $region37: #{tpu_custom_call.1} parent=19 // pred_check
        %p358 = pneg %p167
      $region38: #{tpu_custom_call.1} parent=19 // pred_check_branch
        %360 = sbr.rel (%p358) target = $region40
      $region39: #{tpu_custom_call.1} parent=19 // pred_region
        %s361 = sadd.s32 %s23, 1
        %p362 = scmp.lt.s32.totalorder %s22, 1
        %s363 = scalar_select %p362, %s22, 1
        %p364 = scmp.lt.s32.totalorder %s361, 17
        %s365 = scalar_select %p364, %s361, 17
        %s366 = smul.addr %s365, 3
        %s367 = smul.addr %s363, 54
        %s368 = sadd.s32 %s366, %s367
        %s369 = smul.addr %s368, 8
        %s370 = scalar_lea.vmem %s4, %s369
        %s371 = sadd.s32 %s23, 1
      $region40: #{tpu_custom_call.1} parent=19 // pred_fallthru
        _
      // Predicated region
      $region41: #{tpu_custom_call.1} parent=19 // pred_check
        %p372 = pneg %p197
      $region42: #{tpu_custom_call.1} parent=19 // pred_check_branch
        %374 = sbr.rel (%p372) target = $region44
      $region43: #{tpu_custom_call.1} parent=19 // pred_region
        %s375 = sadd.s32 %s23, 2
        %p376 = scmp.lt.s32.totalorder %s22, 1
        %s377 = scalar_select %p376, %s22, 1
        %p378 = scmp.lt.s32.totalorder %s375, 17
        %s379 = scalar_select %p378, %s375, 17
        %s380 = smul.addr %s379, 3
        %s381 = smul.addr %s377, 54
        %s382 = sadd.s32 %s380, %s381
        %s383 = smul.addr %s382, 8
        %s384 = scalar_lea.vmem %s5, %s383
        %s385 = sadd.s32 %s23, 2
      $region44: #{tpu_custom_call.1} parent=19 // pred_fallthru
        _
    $region20: #{tpu_custom_call.1} parent=5 // pred_fallthru
      _
    %p386 = scmp.le.s32.totalorder 1, %s15
    %p387 = scmp.lt.s32.totalorder %s15, 33
    %p388 = pnand %p386, %p387
    %p389 = pneg %p388
    // Predicated region
    $region45: #{tpu_custom_call.1} parent=5 // pred_check
      _
    $region46: #{tpu_custom_call.1} parent=5 // pred_check_branch
      %391 = sbr.rel (%p388) target = $region48
    $region47: #{tpu_custom_call.1} parent=5 // pred_region
      %s392 = ssub.s32 %s15, 1
      %p393 = scmp.lt.s32.totalorder %s24, 1
      %s394 = scalar_select %p393, %s24, 1
      %p395 = scmp.lt.s32.totalorder %s25, 17
      %s396 = scalar_select %p395, %s25, 17
      %s397 = smul.addr %s396, 3
      %s398 = smul.addr %s394, 54
      %s399 = sadd.s32 %s397, %s398
      %s400 = smul.addr %s399, 8
      %s401 = scalar_lea.vmem %s0, %s400
      %p402 = pneg %p55
      %p403 = pneg %p52
      %s404 = sadd.s32 %s25, 1
      %p405 = scmp.lt.s32.totalorder %s24, 1
      %s406 = scalar_select %p405, %s24, 1
      %p407 = scmp.lt.s32.totalorder %s404, 17
      %s408 = scalar_select %p407, %s404, 17
      %s409 = smul.addr %s408, 3
      %s410 = smul.addr %s406, 54
      %s411 = sadd.s32 %s409, %s410
      %s412 = smul.addr %s411, 8
      %s413 = scalar_lea.vmem %s1, %s412
      %p414 = pneg %p85
      %p415 = pneg %p82
      %s416 = sadd.s32 %s25, 2
      %p417 = scmp.lt.s32.totalorder %s24, 1
      %s418 = scalar_select %p417, %s24, 1
      %p419 = scmp.lt.s32.totalorder %s416, 17
      %s420 = scalar_select %p419, %s416, 17
      %s421 = smul.addr %s420, 3
      %s422 = smul.addr %s418, 54
      %s423 = sadd.s32 %s421, %s422
      %s424 = smul.addr %s423, 8
      %s425 = scalar_lea.vmem %s2, %s424
      %p426 = pneg %p115
      %p427 = pneg %p112
      %p428 = scmp.lt.s32.totalorder %s24, 1
      %s429 = scalar_select %p428, %s24, 1
      %p430 = scmp.lt.s32.totalorder %s25, 17
      %s431 = scalar_select %p430, %s25, 17
      %s432 = smul.addr %s431, 3
      %s433 = smul.addr %s429, 54
      %s434 = sadd.s32 %s432, %s433
      %s435 = smul.addr %s434, 8
      %s436 = scalar_lea.vmem %s3, %s435
      %p437 = pneg %p143
      %p438 = pneg %p140
      %s439 = sadd.s32 %s25, 1
      %p440 = scmp.lt.s32.totalorder %s24, 1
      %s441 = scalar_select %p440, %s24, 1
      %p442 = scmp.lt.s32.totalorder %s439, 17
      %s443 = scalar_select %p442, %s439, 17
      %s444 = smul.addr %s443, 3
      %s445 = smul.addr %s441, 54
      %s446 = sadd.s32 %s444, %s445
      %s447 = smul.addr %s446, 8
      %s448 = scalar_lea.vmem %s4, %s447
      %p449 = pneg %p173
      %p450 = pneg %p170
      %s451 = sadd.s32 %s25, 2
      %p452 = scmp.lt.s32.totalorder %s24, 1
      %s453 = scalar_select %p452, %s24, 1
      %p454 = scmp.lt.s32.totalorder %s451, 17
      %s455 = scalar_select %p454, %s451, 17
      %s456 = smul.addr %s455, 3
      %s457 = smul.addr %s453, 54
      %s458 = sadd.s32 %s456, %s457
      %s459 = smul.addr %s458, 8
      %s460 = scalar_lea.vmem %s5, %s459
      %p461 = pneg %p203
      %p462 = pneg %p200
      %p463 = pneg %p224
      %p464 = pneg %p221
      %p465 = pneg %p254
      %p466 = pneg %p251
      %s467 = smul.u32 %s24, 16
      %s468 = sadd.s32 %s467, %s25
      %s469 = smul.u32 2, %s468
      %p470 = scmp.lt.s32.totalorder %s469, 63
      %s471 = scalar_select %p470, %s469, 63
      %s472 = smul.addr %s471, 4
      %s473 = scalar_lea.vmem %s7, %s472
      %p474 = pneg %p284
      %p475 = pneg %p281
      %s476 = smul.u32 %s24, 16
      %s477 = sadd.s32 %s476, %s25
      %p478 = scmp.lt.s32.totalorder %s477, 31
      %s479 = scalar_select %p478, %s477, 31
      %s480 = smul.addr %s479, 2
      %s481 = scalar_lea.vmem %s8, %s480
      %p482 = scmp.lt.s32.totalorder %s24, 1
      %s483 = scalar_select %p482, %s24, 1
      %p484 = scmp.lt.s32.totalorder %s25, 17
      %s485 = scalar_select %p484, %s25, 17
      %s486 = smul.addr %s485, 3
      %s487 = smul.addr %s483, 54
      %s488 = sadd.s32 %s486, %s487
      %s489 = smul.addr %s488, 8
      %s490 = scalar_lea.vmem %s0, %s489
      %s491 = sadd.s32 %s25, 1
      %p492 = scmp.lt.s32.totalorder %s24, 1
      %s493 = scalar_select %p492, %s24, 1
      %p494 = scmp.lt.s32.totalorder %s491, 17
      %s495 = scalar_select %p494, %s491, 17
      %s496 = smul.addr %s495, 3
      %s497 = smul.addr %s493, 54
      %s498 = sadd.s32 %s496, %s497
      %s499 = smul.addr %s498, 8
      %s500 = scalar_lea.vmem %s1, %s499
      %s501 = sadd.s32 %s25, 1
      %s502 = sadd.s32 %s25, 2
      %p503 = scmp.lt.s32.totalorder %s24, 1
      %s504 = scalar_select %p503, %s24, 1
      %p505 = scmp.lt.s32.totalorder %s502, 17
      %s506 = scalar_select %p505, %s502, 17
      %s507 = smul.addr %s506, 3
      %s508 = smul.addr %s504, 54
      %s509 = sadd.s32 %s507, %s508
      %s510 = smul.addr %s509, 8
      %s511 = scalar_lea.vmem %s2, %s510
      %s512 = sadd.s32 %s25, 2
      %p513 = scmp.lt.s32.totalorder %s24, 1
      %s514 = scalar_select %p513, %s24, 1
      %p515 = scmp.lt.s32.totalorder %s25, 17
      %s516 = scalar_select %p515, %s25, 17
      %s517 = smul.addr %s516, 3
      %s518 = smul.addr %s514, 54
      %s519 = sadd.s32 %s517, %s518
      %s520 = smul.addr %s519, 8
      %s521 = scalar_lea.vmem %s3, %s520
      %s522 = sadd.s32 %s25, 1
      %p523 = scmp.lt.s32.totalorder %s24, 1
      %s524 = scalar_select %p523, %s24, 1
      %p525 = scmp.lt.s32.totalorder %s522, 17
      %s526 = scalar_select %p525, %s522, 17
      %s527 = smul.addr %s526, 3
      %s528 = smul.addr %s524, 54
      %s529 = sadd.s32 %s527, %s528
      %s530 = smul.addr %s529, 8
      %s531 = scalar_lea.vmem %s4, %s530
      %s532 = sadd.s32 %s25, 1
      %s533 = sadd.s32 %s25, 2
      %p534 = scmp.lt.s32.totalorder %s24, 1
      %s535 = scalar_select %p534, %s24, 1
      %p536 = scmp.lt.s32.totalorder %s533, 17
      %s537 = scalar_select %p536, %s533, 17
      %s538 = smul.addr %s537, 3
      %s539 = smul.addr %s535, 54
      %s540 = sadd.s32 %s538, %s539
      %s541 = smul.addr %s540, 8
      %s542 = scalar_lea.vmem %s5, %s541
      %s543 = sadd.s32 %s25, 2
      %s544 = smul.u32 %s24, 16
      %s545 = sadd.s32 %s544, %s25
      %s546 = smul.u32 2, %s545
      %p547 = scmp.lt.s32.totalorder %s546, 63
      %s548 = scalar_select %p547, %s546, 63
      %s549 = smul.addr %s548, 4
      %s550 = scalar_lea.vmem %s7, %s549
      %s551 = smul.u32 %s24, 16
      %s552 = sadd.s32 %s551, %s25
      %s553 = smul.u32 2, %s552
      %s554 = smul.u32 %s24, 16
      %s555 = sadd.s32 %s554, %s25
      %p556 = scmp.lt.s32.totalorder %s555, 31
      %s557 = scalar_select %p556, %s555, 31
      %s558 = smul.addr %s557, 2
      %s559 = scalar_lea.vmem %s8, %s558
      %s560 = smul.u32 %s24, 16
      %s561 = sadd.s32 %s560, %s25
      %v563 = vld [vmem:[%s490] sm:$0xff]
      %v564 = vld [vmem:[%s490 + $0x8] sm:$0xff]
      %v565 = vld [vmem:[%s490 + $0x10] sm:$0x3]
      %v566 = vld [vmem:[%s500] sm:$0xff]
      %v567 = vld [vmem:[%s500 + $0x8] sm:$0xff]
      %v568 = vld [vmem:[%s500 + $0x10] sm:$0x3]
      %v569 = vld [vmem:[%s511] sm:$0xff]
      %v570 = vld [vmem:[%s511 + $0x8] sm:$0xff]
      %v571 = vld [vmem:[%s511 + $0x10] sm:$0x3]
      %v572 = vld [vmem:[%s521] sm:$0xff]
      %v573 = vld [vmem:[%s521 + $0x8] sm:$0xff]
      %v574 = vld [vmem:[%s521 + $0x10] sm:$0x3]
      %v575 = vld [vmem:[%s531] sm:$0xff]
      %v576 = vld [vmem:[%s531 + $0x8] sm:$0xff]
      %v577 = vld [vmem:[%s531 + $0x10] sm:$0x3]
      %v578 = vld [vmem:[%s542] sm:$0xff]
      %v579 = vld [vmem:[%s542 + $0x8] sm:$0xff]
      %v580 = vld [vmem:[%s542 + $0x10] sm:$0x3]
      %vm584 = vcmask 1046528
      %v585 = vrot.slane %v566, 1
      %v586 = vrot.slane %v567, 1
      %v587 = vsel %vm584, %v585, %v586
      %v588 = vrot.slane %v568, 1
      %v589 = vsel %vm584, %v586, %v588
      %v592 = vsub.f32 %v563, %v587
      %v593 = vsub.f32 %v564, %v589
      %v597 = vrot.slane %v575, 1
      %v598 = vrot.slane %v576, 1
      %v599 = vsel %vm584, %v597, %v598
      %v600 = vrot.slane %v577, 1
      %v601 = vsel %vm584, %v598, %v600
      %v604 = vsub.f32 %v572, %v599
      %v605 = vsub.f32 %v573, %v601
      %v606 = vmul.f32 %v604, %v604
      %v607 = vmul.f32 %v605, %v605
      %v608 = vmul.f32 %v606, 0.25
      %v609 = vmul.f32 %v607, 0.25
      %v610 = vadd.f32 %v608, 1.0
      %v611 = vadd.f32 %v609, 1.0
      %v612 = vrsqrt.pop %v610
      %v613 = vrsqrt.pop %v611
      %v614 = vmul.f32 %v592, %v612
      %v615 = vmul.f32 %v593, %v613
      %vm616 = vcmask 31744
      %617 = vst.msk [vmem:[#allocation2] sm:$0xff] %vm616, %v614
      %618 = vst.msk [vmem:[#allocation2 + $0x8] sm:$0xff] %vm616, %v615
      %v619 = vsub.f32 %v563, %v566
      %v620 = vsub.f32 %v564, %v567
      %v621 = vsub.f32 %v565, %v568
      %v622 = vsub.f32 %v572, %v575
      %v623 = vsub.f32 %v573, %v576
      %v624 = vsub.f32 %v574, %v577
      %v625 = vmul.f32 %v622, %v622
      %v626 = vmul.f32 %v623, %v623
      %v627 = vmul.f32 %v624, %v624
      %v628 = vmul.f32 %v625, 0.25
      %v629 = vmul.f32 %v626, 0.25
      %v630 = vmul.f32 %v627, 0.25
      %v631 = vadd.f32 %v628, 1.0
      %v632 = vadd.f32 %v629, 1.0
      %v633 = vadd.f32 %v630, 1.0
      %v634 = vrsqrt.pop %v631
      %v635 = vrsqrt.pop %v632
      %v636 = vrsqrt.pop %v633
      %v637 = vmul.f32 %v619, %v634
      %v638 = vmul.f32 %v620, %v635
      %v639 = vmul.f32 %v621, %v636
      %643 = vrot.lane.b32.xlu0 %v637, 4
      %v644 = vpop.permute.xlu0 %643
      %645 = vrot.lane.b32.xlu0 %v638, 4
      %v646 = vpop.permute.xlu0 %645
      %647 = vrot.lane.b32.xlu0 %v639, 4
      %v648 = vpop.permute.xlu0 %647
      %vm652 = vcmask 64545
      %653 = vst.msk [vmem:[#allocation2 - $0x1] sm:$0xfe] %vm652, %v644
      %vm654 = vcmask 64544
      %655 = vst.msk [vmem:[#allocation2 + $0x7] sm:$0xff] %vm654, %v646
      %vm656 = vcmask 57376
      %657 = vst.msk [vmem:[#allocation2 + $0xf] sm:$0x1] %vm656, %v648
      %vm658 = vcmask 1040384
      %v659 = vrot.slane %v566, 7
      %v660 = vrot.slane %v567, 7
      %v661 = vsel %vm658, %v659, %v660
      %v662 = vrot.slane %v568, 7
      %v663 = vsel %vm658, %v660, %v662
      %v667 = vsub.f32 %v563, %v659
      %v668 = vsub.f32 %v564, %v661
      %v669 = vsub.f32 %v565, %v663
      %v670 = vrot.slane %v575, 7
      %v671 = vrot.slane %v576, 7
      %v672 = vsel %vm658, %v670, %v671
      %v673 = vrot.slane %v577, 7
      %v674 = vsel %vm658, %v671, %v673
      %v678 = vsub.f32 %v572, %v670
      %v679 = vsub.f32 %v573, %v672
      %v680 = vsub.f32 %v574, %v674
      %v681 = vmul.f32 %v678, %v678
      %v682 = vmul.f32 %v679, %v679
      %v683 = vmul.f32 %v680, %v680
      %v684 = vmul.f32 %v681, 0.25
      %v685 = vmul.f32 %v682, 0.25
      %v686 = vmul.f32 %v683, 0.25
      %v687 = vadd.f32 %v684, 1.0
      %v688 = vadd.f32 %v685, 1.0
      %v689 = vadd.f32 %v686, 1.0
      %v690 = vrsqrt.pop %v687
      %v691 = vrsqrt.pop %v688
      %v692 = vrsqrt.pop %v689
      %v693 = vmul.f32 %v667, %v690
      %v694 = vmul.f32 %v668, %v691
      %v695 = vmul.f32 %v669, %v692
      %699 = vrot.lane.b32.xlu0 %v693, 8
      %v700 = vpop.permute.xlu0 %699
      %701 = vrot.lane.b32.xlu0 %v694, 8
      %v702 = vpop.permute.xlu0 %701
      %703 = vrot.lane.b32.xlu0 %v695, 8
      %v704 = vpop.permute.xlu0 %703
      %vm708 = vcmask 97346
      %709 = vst.msk [vmem:[#allocation2 - $0x2] sm:$0xfc] %vm708, %v700
      %vm710 = vcmask 97344
      %711 = vst.msk [vmem:[#allocation2 + $0x6] sm:$0xff] %vm710, %v702
      %vm712 = vcmask 91200
      %713 = vst.msk [vmem:[#allocation2 + $0xe] sm:$0x3] %vm712, %v704
      %v714 = vsub.f32 %v566, %v587
      %v715 = vsub.f32 %v567, %v589
      %v716 = vsub.f32 %v575, %v599
      %v717 = vsub.f32 %v576, %v601
      %v718 = vmul.f32 %v716, %v716
      %v719 = vmul.f32 %v717, %v717
      %v720 = vmul.f32 %v718, 0.25
      %v721 = vmul.f32 %v719, 0.25
      %v722 = vadd.f32 %v720, 1.0
      %v723 = vadd.f32 %v721, 1.0
      %v724 = vrsqrt.pop %v722
      %v725 = vrsqrt.pop %v723
      %v726 = vmul.f32 %v714, %v724
      %v727 = vmul.f32 %v715, %v725
      %730 = vrot.lane.b32.xlu0 %v726, 12
      %v731 = vpop.permute.xlu0 %730
      %732 = vrot.lane.b32.xlu0 %v727, 12
      %v733 = vpop.permute.xlu0 %732
      %vm736 = vcmask 130144
      %737 = vst.msk [vmem:[#allocation2] sm:$0xff] %vm736, %v731
      %738 = vst.msk [vmem:[#allocation2 + $0x8] sm:$0xff] %vm736, %v733
      %v739 = vsub.f32 %v566, %v566
      %v740 = vsub.f32 %v567, %v567
      %v741 = vsub.f32 %v568, %v568
      %v742 = vsub.f32 %v575, %v575
      %v743 = vsub.f32 %v576, %v576
      %v744 = vsub.f32 %v577, %v577
      %v745 = vmul.f32 %v742, %v742
      %v746 = vmul.f32 %v743, %v743
      %v747 = vmul.f32 %v744, %v744
      %v748 = vmul.f32 %v745, 0.25
      %v749 = vmul.f32 %v746, 0.25
      %v750 = vmul.f32 %v747, 0.25
      %v751 = vadd.f32 %v748, 1.0
      %v752 = vadd.f32 %v749, 1.0
      %v753 = vadd.f32 %v750, 1.0
      %v754 = vrsqrt.pop %v751
      %v755 = vrsqrt.pop %v752
      %v756 = vrsqrt.pop %v753
      %v757 = vmul.f32 %v739, %v754
      %v758 = vmul.f32 %v740, %v755
      %v759 = vmul.f32 %v741, %v756
      %763 = vrot.lane.b32.xlu0 %v757, 16
      %v764 = vpop.permute.xlu0 %763
      %765 = vrot.lane.b32.xlu0 %v758, 16
      %v766 = vpop.permute.xlu0 %765
      %767 = vrot.lane.b32.xlu0 %v759, 16
      %v768 = vpop.permute.xlu0 %767
      %vm772 = vcmask 162945
      %773 = vst.msk [vmem:[#allocation2 - $0x1] sm:$0xfe] %vm772, %v764
      %vm774 = vcmask 162944
      %775 = vst.msk [vmem:[#allocation2 + $0x7] sm:$0xff] %vm774, %v766
      %vm776 = vcmask 155776
      %777 = vst.msk [vmem:[#allocation2 + $0xf] sm:$0x1] %vm776, %v768
      %v778 = vsub.f32 %v566, %v659
      %v779 = vsub.f32 %v567, %v661
      %v780 = vsub.f32 %v568, %v663
      %v781 = vsub.f32 %v575, %v670
      %v782 = vsub.f32 %v576, %v672
      %v783 = vsub.f32 %v577, %v674
      %v784 = vmul.f32 %v781, %v781
      %v785 = vmul.f32 %v782, %v782
      %v786 = vmul.f32 %v783, %v783
      %v787 = vmul.f32 %v784, 0.25
      %v788 = vmul.f32 %v785, 0.25
      %v789 = vmul.f32 %v786, 0.25
      %v790 = vadd.f32 %v787, 1.0
      %v791 = vadd.f32 %v788, 1.0
      %v792 = vadd.f32 %v789, 1.0
      %v793 = vrsqrt.pop %v790
      %v794 = vrsqrt.pop %v791
      %v795 = vrsqrt.pop %v792
      %v796 = vmul.f32 %v778, %v793
      %v797 = vmul.f32 %v779, %v794
      %v798 = vmul.f32 %v780, %v795
      %802 = vrot.lane.b32.xlu0 %v796, 20
      %v803 = vpop.permute.xlu0 %802
      %804 = vrot.lane.b32.xlu0 %v797, 20
      %v805 = vpop.permute.xlu0 %804
      %806 = vrot.lane.b32.xlu0 %v798, 20
      %v807 = vpop.permute.xlu0 %806
      %vm811 = vcmask 195746
      %812 = vst.msk [vmem:[#allocation2 - $0x2] sm:$0xfc] %vm811, %v803
      %vm813 = vcmask 195744
      %814 = vst.msk [vmem:[#allocation2 + $0x6] sm:$0xff] %vm813, %v805
      %vm815 = vcmask 189600
      %816 = vst.msk [vmem:[#allocation2 + $0xe] sm:$0x3] %vm815, %v807
      %v817 = vsub.f32 %v569, %v587
      %v818 = vsub.f32 %v570, %v589
      %v819 = vsub.f32 %v578, %v599
      %v820 = vsub.f32 %v579, %v601
      %v821 = vmul.f32 %v819, %v819
      %v822 = vmul.f32 %v820, %v820
      %v823 = vmul.f32 %v821, 0.25
      %v824 = vmul.f32 %v822, 0.25
      %v825 = vadd.f32 %v823, 1.0
      %v826 = vadd.f32 %v824, 1.0
      %v827 = vrsqrt.pop %v825
      %v828 = vrsqrt.pop %v826
      %v829 = vmul.f32 %v817, %v827
      %v830 = vmul.f32 %v818, %v828
      %833 = vrot.lane.b32.xlu0 %v829, 24
      %v834 = vpop.permute.xlu0 %833
      %835 = vrot.lane.b32.xlu0 %v830, 24
      %v836 = vpop.permute.xlu0 %835
      %vm839 = vcmask 228544
      %840 = vst.msk [vmem:[#allocation2] sm:$0xff] %vm839, %v834
      %841 = vst.msk [vmem:[#allocation2 + $0x8] sm:$0xff] %vm839, %v836
      %v842 = vsub.f32 %v569, %v566
      %v843 = vsub.f32 %v570, %v567
      %v844 = vsub.f32 %v571, %v568
      %v845 = vsub.f32 %v578, %v575
      %v846 = vsub.f32 %v579, %v576
      %v847 = vsub.f32 %v580, %v577
      %v848 = vmul.f32 %v845, %v845
      %v849 = vmul.f32 %v846, %v846
      %v850 = vmul.f32 %v847, %v847
      %v851 = vmul.f32 %v848, 0.25
      %v852 = vmul.f32 %v849, 0.25
      %v853 = vmul.f32 %v850, 0.25
      %v854 = vadd.f32 %v851, 1.0
      %v855 = vadd.f32 %v852, 1.0
      %v856 = vadd.f32 %v853, 1.0
      %v857 = vrsqrt.pop %v854
      %v858 = vrsqrt.pop %v855
      %v859 = vrsqrt.pop %v856
      %v860 = vmul.f32 %v842, %v857
      %v861 = vmul.f32 %v843, %v858
      %v862 = vmul.f32 %v844, %v859
      %866 = vrot.lane.b32.xlu0 %v860, 28
      %v867 = vpop.permute.xlu0 %866
      %868 = vrot.lane.b32.xlu0 %v861, 28
      %v869 = vpop.permute.xlu0 %868
      %870 = vrot.lane.b32.xlu0 %v862, 28
      %v871 = vpop.permute.xlu0 %870
      %vm875 = vcmask 261345
      %876 = vst.msk [vmem:[#allocation2 - $0x1] sm:$0xfe] %vm875, %v867
      %vm877 = vcmask 261344
      %878 = vst.msk [vmem:[#allocation2 + $0x7] sm:$0xff] %vm877, %v869
      %vm879 = vcmask 254176
      %880 = vst.msk [vmem:[#allocation2 + $0xf] sm:$0x1] %vm879, %v871
      %v881 = vsub.f32 %v569, %v659
      %v882 = vsub.f32 %v570, %v661
      %v883 = vsub.f32 %v571, %v663
      %v884 = vsub.f32 %v578, %v670
      %v885 = vsub.f32 %v579, %v672
      %v886 = vsub.f32 %v580, %v674
      %v887 = vmul.f32 %v884, %v884
      %v888 = vmul.f32 %v885, %v885
      %v889 = vmul.f32 %v886, %v886
      %v890 = vmul.f32 %v887, 0.25
      %v891 = vmul.f32 %v888, 0.25
      %v892 = vmul.f32 %v889, 0.25
      %v893 = vadd.f32 %v890, 1.0
      %v894 = vadd.f32 %v891, 1.0
      %v895 = vadd.f32 %v892, 1.0
      %v896 = vrsqrt.pop %v893
      %v897 = vrsqrt.pop %v894
      %v898 = vrsqrt.pop %v895
      %v899 = vmul.f32 %v881, %v896
      %v900 = vmul.f32 %v882, %v897
      %v901 = vmul.f32 %v883, %v898
      %905 = vrot.lane.b32.xlu0 %v899, 32
      %v906 = vpop.permute.xlu0 %905
      %907 = vrot.lane.b32.xlu0 %v900, 32
      %v908 = vpop.permute.xlu0 %907
      %909 = vrot.lane.b32.xlu0 %v901, 32
      %v910 = vpop.permute.xlu0 %909
      %vm914 = vcmask 294146
      %915 = vst.msk [vmem:[#allocation2 - $0x2] sm:$0xfc] %vm914, %v906
      %vm916 = vcmask 294144
      %917 = vst.msk [vmem:[#allocation2 + $0x6] sm:$0xff] %vm916, %v908
      %vm918 = vcmask 288000
      %919 = vst.msk [vmem:[#allocation2 + $0xe] sm:$0x3] %vm918, %v910
      %v920 = vld [vmem:[#allocation2] sm:$0xff]
      %v921 = vld [vmem:[#allocation2 + $0x8] sm:$0xff]
      %v922 = vpack.c.bf16 %v921, %v920
      %v923 = vld [vmem:[%s6] sm:$0xf]
      %v924 = vld [vmem:[%s6 + $0x4] sm:$0xf]
      %v925 = vld [vmem:[%s6 + $0x8] sm:$0xf]
      %v926 = vld [vmem:[%s6 + $0xc] sm:$0xf]
      %v927 = vld [vmem:[%s6 + $0x10] sm:$0x3]
      %v933 = vunpack.c.l.b16 %v923
      %v934 = vunpack.c.l.b16 %v924
      %v935 = vunpack.c.l.b16 %v925
      %v936 = vunpack.c.l.b16 %v926
      %v937 = vunpack.c.l.b16 %v927
      %v938 = vpack.c.b16 %v934, %v933
      %v939 = vpack.c.b16 %v936, %v935
      %v940 = vpack.c.b16 %v937, %v937
      %vm943 = vcmask 293888
      %v945 = vsel %vm943, %v922, 0
      %vm947 = vcmask 1041408
      %v949 = vsel %vm947, %v940, 0
      %951 = vmatprep.subr.bf16.mxu0 0
      %952 = vmatpush1.bf16.msra.mxu0 %v938
      %953 = vmatprep.subr.bf16.mxu0 0
      %954 = vmatpush1.bf16.msra.mxu0 %v939
      %955 = vmatprep.subr.bf16.mxu0 0
      %956 = vmatpush1.bf16.msra.mxu0 %v949
      %957 = vmatprep.subr.bf16.mxu0 0
      %958 = vmatpush1.bf16.msra.mxu0 0
      %959 = vmatprep.subr.bf16.mxu0 0
      %960 = vmatpush1.bf16.msra.mxu0 0
      %961 = vmatprep.subr.bf16.mxu0 0
      %962 = vmatpush1.bf16.msra.mxu0 0
      %963 = vmatprep.subr.bf16.mxu0 0
      %964 = vmatpush1.bf16.msra.mxu0 0
      %965 = vmatprep.subr.bf16.mxu0 0
      %966 = vmatpush1.bf16.msra.mxu0 0
      %967 = vmatprep.subr.bf16.mxu0 0
      %968 = vmatpush1.bf16.msra.mxu0 0
      %969 = vmatprep.subr.bf16.mxu0 0
      %970 = vmatpush1.bf16.msra.mxu0 0
      %971 = vmatprep.subr.bf16.mxu0 0
      %972 = vmatpush1.bf16.msra.mxu0 0
      %973 = vmatprep.subr.bf16.mxu0 0
      %974 = vmatpush1.bf16.msra.mxu0 0
      %975 = vmatprep.subr.bf16.mxu0 0
      %976 = vmatpush1.bf16.msra.mxu0 0
      %977 = vmatprep.subr.bf16.mxu0 0
      %978 = vmatpush1.bf16.msra.mxu0 0
      %979 = vmatprep.subr.bf16.mxu0 0
      %980 = vmatpush1.bf16.msra.mxu0 0
      %981 = vmatprep.subr.bf16.mxu0 0
      %982 = vmatpush1.bf16.msra.mxu0 0
      %983 = vmatprep.mubr.bf16.mxu0 0
      %984 = vmatmul.mubr.bf16.gmra.mrb[0].mxu0 %v945
      %v985 = vpop.f32.mrb[0].mxu0
      %v986 = vadd.f32 0.0, %v985
      %v987 = vpop.f32.mrb[0].mxu0
      %v988 = vpop.f32.mrb[0].mxu0
      %v989 = vadd.f32 0.0, %v988
      %v990 = vpop.f32.mrb[0].mxu0
      %991 = vdwg.mxu0
      %v992 = vpack.c.bf16 %v989, %v986
      %v994 = vunpack.c.l.b16 %v992
      %v995 = vunpack.c.h.b16 %v992
      %v996 = vpack.c.b16 %v994, %v994
      %v997 = vpack.c.b16 %v995, %v995
      %vm1000 = vcmask 60416
      %1001 = vst.msk [vmem:[%s550] sm:$0xf] %vm1000, %v996
      %1002 = vst.msk [vmem:[%s550 + $0x4] sm:$0xf] %vm1000, %v997
      %vm1003 = vcmask 64512
      %v1004 = vsel %vm1003, %v986, 0.0
      %v1005 = vsel %vm1003, %v989, 0.0
      %v1006 = vadd.f32 %v1004, %v1005
      %v1007 = vrot.slane %v1006, 4
      %v1008 = vadd.f32 %v1006, %v1007
      %v1009 = vrot.slane %v1008, 2
      %v1010 = vadd.f32 %v1008, %v1009
      %v1011 = vrot.slane %v1010, 1
      %v1012 = vadd.f32 %v1010, %v1011
      %vm1013 = vcmask 57344
      %1014 = vst.msk [vmem:[%s559] sm:$0x1] %vm1013, %v1012
      %v1015 = vmul.f32 %v986, %v986
      %v1016 = vmul.f32 %v989, %v989
      %v1017 = vsel %vm1003, %v1015, 0.0
      %v1018 = vsel %vm1003, %v1016, 0.0
      %v1019 = vadd.f32 %v1017, %v1018
      %v1020 = vrot.slane %v1019, 4
      %v1021 = vadd.f32 %v1019, %v1020
      %v1022 = vrot.slane %v1021, 2
      %v1023 = vadd.f32 %v1021, %v1022
      %v1024 = vrot.slane %v1023, 1
      %v1025 = vadd.f32 %v1023, %v1024
      %1026 = vst.msk [vmem:[%s559 + $0x1] sm:$0x1] %vm1013, %v1025
      %s1027 = smul.u32 %s24, 16
      %s1028 = sadd.s32 %s1027, %s25
      %s1029 = smul.u32 2, %s1028
      %p1030 = scmp.lt.s32.totalorder %s1029, 63
      %s1031 = scalar_select %p1030, %s1029, 63
      %s1032 = smul.addr %s1031, 4
      %s1033 = scalar_lea.vmem %s7, %s1032
      %s1034 = smul.u32 %s24, 16
      %s1035 = sadd.s32 %s1034, %s25
      %p1036 = scmp.lt.s32.totalorder %s1035, 31
      %s1037 = scalar_select %p1036, %s1035, 31
      %s1038 = smul.addr %s1037, 2
      %s1039 = scalar_lea.vmem %s8, %s1038
      // Predicated region
      $region49: #{tpu_custom_call.1} parent=47 // pred_check
        %p1040 = pneg %p251
      $region50: #{tpu_custom_call.1} parent=47 // pred_check_branch
        %1042 = sbr.rel (%p1040) target = $region52
      $region51: #{tpu_custom_call.1} parent=47 // pred_region
        %s1043 = smul.u32 %s24, 16
        %s1044 = sadd.s32 %s1043, %s25
        %s1045 = smul.u32 2, %s1044
      $region52: #{tpu_custom_call.1} parent=47 // pred_fallthru
        _
      // Predicated region
      $region53: #{tpu_custom_call.1} parent=47 // pred_check
        %p1046 = pneg %p281
      $region54: #{tpu_custom_call.1} parent=47 // pred_check_branch
        %1048 = sbr.rel (%p1046) target = $region56
      $region55: #{tpu_custom_call.1} parent=47 // pred_region
        %s1049 = smul.u32 %s24, 16
        %s1050 = sadd.s32 %s1049, %s25
      $region56: #{tpu_custom_call.1} parent=47 // pred_fallthru
        _
    $region48: #{tpu_custom_call.1} parent=5 // pred_fallthru
      _
    %p1051 = scmp.le.s32.totalorder 2, %s15
    // Predicated region
    $region57: #{tpu_custom_call.1} parent=5 // pred_check
      %p1052 = pneg %p1051
    $region58: #{tpu_custom_call.1} parent=5 // pred_check_branch
      %1054 = sbr.rel (%p1052) target = $region60
    $region59: #{tpu_custom_call.1} parent=5 // pred_region
      %s1055 = ssub.s32 %s15, 2
      // Predicated region
      $region61: #{tpu_custom_call.1} parent=59 // pred_check
        %p1056 = pneg %p257
      $region62: #{tpu_custom_call.1} parent=59 // pred_check_branch
        %1058 = sbr.rel (%p1056) target = $region64
      $region63: #{tpu_custom_call.1} parent=59 // pred_region
        %s1059 = smul.u32 %s26, 16
        %s1060 = sadd.s32 %s1059, %s27
        %s1061 = smul.u32 2, %s1060
        %p1062 = scmp.lt.s32.totalorder %s1061, 63
        %s1063 = scalar_select %p1062, %s1061, 63
        %s1064 = smul.addr %s1063, 4
        %s1065 = scalar_lea.vmem %s7, %s1064
      $region64: #{tpu_custom_call.1} parent=59 // pred_fallthru
        _
      // Predicated region
      $region65: #{tpu_custom_call.1} parent=59 // pred_check
        %p1066 = pneg %p287
      $region66: #{tpu_custom_call.1} parent=59 // pred_check_branch
        %1068 = sbr.rel (%p1066) target = $region68
      $region67: #{tpu_custom_call.1} parent=59 // pred_region
        %s1069 = smul.u32 %s26, 16
        %s1070 = sadd.s32 %s1069, %s27
        %p1071 = scmp.lt.s32.totalorder %s1070, 31
        %s1072 = scalar_select %p1071, %s1070, 31
        %s1073 = smul.addr %s1072, 2
        %s1074 = scalar_lea.vmem %s8, %s1073
      $region68: #{tpu_custom_call.1} parent=59 // pred_fallthru
        _
    $region60: #{tpu_custom_call.1} parent=5 // pred_fallthru
      _
  $region6: #{tpu_custom_call.1} parent=0 // loop_footer
    %s19 = sadd.s32 1, %s15
  $region7: #{tpu_custom_call.1} parent=0 // loop_footer_branch
    %14 = sbr.rel target = $region3
  $region8: #{tpu_custom_call.1} parent=0 // loop_exit
    _

</llo_original>
